<compile_context>
chip_gen: v6e
topology: v6e:2x2x1
jax: 0.10.0
libtpu: 0.0.40
codegen_flags: <defaults>
</compile_context>

<pallas_src>
import jax
import jax.numpy as jnp
from jax.experimental import pallas as pl
from jax.experimental.pallas import tpu as pltpu

_LANE = 128
_SUBLANE = 8
_ROW_TILE = _LANE * _SUBLANE  # 1024 rows = one full f32 vreg of rows


def _perceptron_kernel(params_ref, x_ref, o_ref):
    # params_ref: SMEM (D+1,) = [w_0 ... w_{D-1}, b]
    # x_ref:      VMEM (D, 1, 8, L)  -- one sublane-dense slab per feature
    # o_ref:      VMEM (1, 8, L)     -- sublane-dense output slab
    d = x_ref.shape[0]
    z = x_ref[0, 0] * params_ref[0]
    for j in range(1, d):          # D is tiny & static -> unrolled at trace time
        z = z + x_ref[j, 0] * params_ref[j]
    z = z + params_ref[d]          # + bias
    # Exact sigmoid: exp goes to the EUP slot, the divide is cheap, and the
    # kernel sits at the HBM roofline regardless.
    o_ref[0] = 1.0 / (1.0 + jnp.exp(-z))


def perceptron_forward_feature_major(xt, weight, bias, *, block_rows=262_144):
    """Forward for feature-major input (preferred layout: no transpose pass).

    xt: (D, N) float32; weight: (1, D); bias: (1,) -> (N, 1) float32.
    """
    d, n = xt.shape
    # Rows per grid step: multiple of 8*128 so input and output tiles are
    # fully (8,128)-dense; clamp for small N to avoid over-padding.
    block_rows = max(_ROW_TILE,
                     min(block_rows, pl.cdiv(n, _ROW_TILE) * _ROW_TILE))
    block_rows = pl.cdiv(block_rows, _ROW_TILE) * _ROW_TILE
    n_pad = pl.cdiv(n, block_rows) * block_rows
    n_blocks = n_pad // block_rows
    lanes = block_rows // _SUBLANE  # lanes per sublane row, multiple of 128

    xt = xt.astype(jnp.float32)
    if n_pad != n:
        xt = jnp.pad(xt, ((0, 0), (0, n_pad - n)))
    # Free (contiguous) reshape into sublane-dense slabs.
    x_slab = xt.reshape(d, n_blocks, _SUBLANE, lanes)

    # [w_0 .. w_{D-1}, b] packed into one tiny SMEM array.
    params = jnp.concatenate(
        [weight.reshape(-1), bias.reshape(-1)]).astype(jnp.float32)

    cost = pl.CostEstimate(
        flops=6 * n_pad,
        transcendentals=n_pad,
        bytes_accessed=(d + 1) * n_pad * 4 + (d + 1) * 4)

    out = pl.pallas_call(
        _perceptron_kernel,
        out_shape=jax.ShapeDtypeStruct((n_blocks, _SUBLANE, lanes),
                                       jnp.float32),
        grid_spec=pl.GridSpec(
            grid=(n_blocks,),
            in_specs=[
                # Scalars stay on the scalar path (SMEM), no VMEM tile / DMA.
                pl.BlockSpec(memory_space=pltpu.MemorySpace.SMEM),
                # (D, 1, 8, L): last two dims fully (8,128)-dense.
                pl.BlockSpec((d, 1, _SUBLANE, lanes),
                             lambda i: (0, i, 0, 0)),
            ],
            out_specs=pl.BlockSpec((1, _SUBLANE, lanes),
                                   lambda i: (i, 0, 0)),
        ),
        compiler_params=pltpu.CompilerParams(
            # Row tiles are independent. (On v7x, CORE_PARALLEL / an explicit
            # 2-TC core_map would shard the tiles across both TensorCores.)
            dimension_semantics=("parallel",),
            # Explicit so v5e's 16 MiB scoped-VMEM default doesn't cap the
            # double-buffered big tiles; ~6 MiB used at the default
            # block_rows, also safe under v7x's 64 MiB physical VMEM.
            vmem_limit_bytes=32 * 1024 * 1024),
        cost_estimate=cost,
    )(params, x_slab)

    # Back to the PyTorch (N, 1) layout; drop row padding.
    return out.reshape(n_pad)[:n].reshape(n, 1)


def perceptron_forward(x, weight, bias, *, block_rows=262_144,
                       min_rows_for_kernel=1024):
    """PyTorch-layout forward: x (N, D), weight (1, D), bias (1,) -> (N, 1)."""
    n, _ = x.shape
    if n < min_rows_for_kernel:
        # Tiny N: pallas_call launch + padding overhead dwarfs the work.
        z = jnp.dot(x.astype(jnp.float32), weight.astype(jnp.float32).T,
                    precision=jax.lax.Precision.HIGHEST) + bias
        return jax.nn.sigmoid(z)
    # Transpose+pad is one fused XLA copy; producers that can emit
    # feature-major x should call perceptron_forward_feature_major directly
    # and skip even that.
    return perceptron_forward_feature_major(
        x.astype(jnp.float32).T, weight, bias, block_rows=block_rows)


def _reference(x, weight, bias):
    z = jnp.dot(x.astype(jnp.float32), weight.astype(jnp.float32).T,
                precision=jax.lax.Precision.HIGHEST) + bias
    return 1.0 / (1.0 + jnp.exp(-z))


if __name__ == "__main__":
    input_size = 2

    # Deterministic parameter init (mimics nn.Linear(2, 1) shapes).
    key = jax.random.PRNGKey(0)
    kw, kb, kx = jax.random.split(key, 3)
    bound = 1.0 / (input_size ** 0.5)
    weight = jax.random.uniform(kw, (1, input_size), jnp.float32, -bound, bound)
    bias = jax.random.uniform(kb, (1,), jnp.float32, -bound, bound)

    # 4 OR-gate combos plus random rows -> N = 2048 so the Pallas path runs.
    gate_inputs = jnp.array([[0.0, 0.0], [0.0, 1.0], [1.0, 0.0], [1.0, 1.0]],
                            dtype=jnp.float32)
    rand_inputs = jax.random.uniform(kx, (2044, input_size), jnp.float32)
    x = jnp.concatenate([gate_inputs, rand_inputs], axis=0)  # (2048, 2)

    out = jax.block_until_ready(perceptron_forward(x, weight, bias))
    ref = _reference(x, weight, bias)
    assert out.shape == (2048, 1), out.shape
    assert jnp.allclose(out, ref, atol=1e-5, rtol=1e-5), (
        float(jnp.abs(out - ref).max()))

    # Tiny-N fast path (pure JAX) on just the gate rows.
    out_small = jax.block_until_ready(
        perceptron_forward(gate_inputs, weight, bias))
    ref_small = _reference(gate_inputs, weight, bias)
    assert out_small.shape == (4, 1), out_small.shape
    assert jnp.allclose(out_small, ref_small, atol=1e-5, rtol=1e-5)

    print("KERNEL_OK")
</pallas_src>

<mosaic_0001>
module attributes {stable_mosaic.version = 11 : i64} {
  func.func @_perceptron_kernel(%arg0: i32, %arg1: memref<3xf32, #tpu.memory_space<smem>>, %arg2: memref<2x1x8x256xf32, #tpu.memory_space<vmem>>, %arg3: memref<1x8x256xf32, #tpu.memory_space<vmem>>) attributes {dimension_semantics = [#tpu.dimension_semantics<parallel>], iteration_bounds = array<i64: 1>, scalar_prefetch = 0 : i64, scratch_operands = 0 : i64, tpu.core_type = #tpu.core_type<tc>, window_params = [{transform_indices = @transform_0, window_bounds = array<i64: 3>}, {transform_indices = @transform_1, window_bounds = array<i64: 2, 1, 8, 256>}, {transform_indices = @transform_2, window_bounds = array<i64: 1, 8, 256>}]} {
    %c0 = arith.constant 0 : index
    %c0_0 = arith.constant 0 : index
    %c0_1 = arith.constant 0 : index
    %c0_2 = arith.constant 0 : index
    %0 = vector.load %arg2[%c0, %c0_0, %c0_1, %c0_2] : memref<2x1x8x256xf32, #tpu.memory_space<vmem>>, vector<1x1x8x256xf32>
    %1 = vector.shape_cast %0 : vector<1x1x8x256xf32> to vector<8x256xf32>
    %c0_3 = arith.constant 0 : index
    %2 = memref.load %arg1[%c0_3] : memref<3xf32, #tpu.memory_space<smem>>
    %3 = vector.broadcast %2 : f32 to vector<8x256xf32>
    %4 = arith.mulf %1, %3 : vector<8x256xf32>
    %c1 = arith.constant 1 : index
    %c0_4 = arith.constant 0 : index
    %c0_5 = arith.constant 0 : index
    %c0_6 = arith.constant 0 : index
    %5 = vector.load %arg2[%c1, %c0_4, %c0_5, %c0_6] : memref<2x1x8x256xf32, #tpu.memory_space<vmem>>, vector<1x1x8x256xf32>
    %6 = vector.shape_cast %5 : vector<1x1x8x256xf32> to vector<8x256xf32>
    %c1_7 = arith.constant 1 : index
    %7 = memref.load %arg1[%c1_7] : memref<3xf32, #tpu.memory_space<smem>>
    %8 = vector.broadcast %7 : f32 to vector<8x256xf32>
    %9 = arith.mulf %6, %8 : vector<8x256xf32>
    %10 = arith.addf %4, %9 : vector<8x256xf32>
    %c2 = arith.constant 2 : index
    %11 = memref.load %arg1[%c2] : memref<3xf32, #tpu.memory_space<smem>>
    %12 = vector.broadcast %11 : f32 to vector<8x256xf32>
    %13 = arith.addf %10, %12 : vector<8x256xf32>
    %cst = arith.constant 0.000000e+00 : f32
    %14 = vector.broadcast %cst : f32 to vector<8x256xf32>
    %15 = arith.subf %14, %13 : vector<8x256xf32>
    %16 = math.exp %15 : vector<8x256xf32>
    %cst_8 = arith.constant 1.000000e+00 : f32
    %17 = vector.broadcast %cst_8 : f32 to vector<8x256xf32>
    %18 = arith.addf %17, %16 : vector<8x256xf32>
    %cst_9 = arith.constant 1.000000e+00 : f32
    %19 = vector.broadcast %cst_9 : f32 to vector<8x256xf32>
    %20 = arith.divf %19, %18 : vector<8x256xf32>
    %c0_10 = arith.constant 0 : index
    %c0_11 = arith.constant 0 : index
    %c0_12 = arith.constant 0 : index
    %21 = vector.load %arg3[%c0_10, %c0_11, %c0_12] : memref<1x8x256xf32, #tpu.memory_space<vmem>>, vector<1x8x256xf32>
    %22 = vector.shape_cast %21 : vector<1x8x256xf32> to vector<8x256xf32>
    %23 = vector.shape_cast %20 : vector<8x256xf32> to vector<1x8x256xf32>
    tpu.vector_store %arg3[%c0_10, %c0_11, %c0_12], %23 {strides = array<i32>} : memref<1x8x256xf32, #tpu.memory_space<vmem>>, vector<1x8x256xf32>,
    return
  }
  func.func @transform_0(%arg0: i32) -> i32 {
    %c0_i32 = arith.constant 0 : i32
    %c0_i32_0 = arith.constant 0 : i32
    return %c0_i32 : i32
  }
  func.func @transform_1(%arg0: i32) -> (i32, i32, i32, i32) {
    %c0_i32 = arith.constant 0 : i32
    %c0_i32_0 = arith.constant 0 : i32
    %c0_i32_1 = arith.constant 0 : i32
    %c0_i32_2 = arith.constant 0 : i32
    return %c0_i32, %arg0, %c0_i32_0, %c0_i32_1 : i32, i32, i32, i32
  }
  func.func @transform_2(%arg0: i32) -> (i32, i32, i32) {
    %c0_i32 = arith.constant 0 : i32
    %c0_i32_0 = arith.constant 0 : i32
    %c0_i32_1 = arith.constant 0 : i32
    return %arg0, %c0_i32, %c0_i32_0 : i32, i32, i32
  }
}

</mosaic_0001>

<llo_original>
// kernel: tpu_custom_call.1
$region0: #{tpu_custom_call.1}
  #allocation0 [shape = 'u32[]', space=smem, size = 0x4, offset = 0x4, fixed_abs, tag = 'smem constant byte address 0x4 - core index']
  #allocation1 [shape = 'u32[144,128]{1,0:T(1,128)}', space=vmem, size = 0x12000, scoped, tag = 'internal scratch']
  %s0 = inlined_call_operand.hbm [shape: f32[3], index: 0, kind: input, shape index: {}]
  %s1 = inlined_call_operand.hbm [shape: f32[2,1,8,256], index: 1, kind: input, shape index: {}]
  %s2 = inlined_call_operand.hbm [shape: f32[1,8,256], index: 2, kind: output, shape index: {}]
  %s3 = sld [smem:[#allocation0]]
  $region26: #{tpu_custom_call.1} parent=0
    _
  %s5 = ssub.s32 1, %s3
  %s6 = scalar_select 0, %s5, %s3
  $region1: #{tpu_custom_call.1} parent=0
    #allocation2 [shape = 'u8[512]{0}', space=smem, size = 0x200, scoped, tag = 'input window, operand 0, single buffered']
    #allocation3 [shape = 's32[1]{0}', space=sflag, size = 0x4, scoped, tag = 'scoped memory for tpu_custom_call.1']
    #allocation4 [shape = 's32[1]{0}', space=sflag, size = 0x4, scoped, tag = 'scoped memory for tpu_custom_call.1']
    #allocation5 [shape = 's32[1]{0}', space=sflag, size = 0x4, scoped, tag = 'scoped memory for tpu_custom_call.1']
    #allocation6 [shape = 'u8[16384]{0}', space=vmem, size = 0x4000, scoped, tag = 'input window, operand 1, single buffered']
    #allocation7 [shape = 'u8[8192]{0}', space=vmem, size = 0x2000, scoped, tag = 'output window, operand 0, single buffered']
    %7 = vsyncpa [#allocation5], 0
    %8 = vsyncpa [#allocation3], 0
    %9 = vsyncpa [#allocation4], 0
    // Predicated region
    $region2: #{tpu_custom_call.1} parent=1 // pred_check
      _
    $region3: #{tpu_custom_call.1} parent=1 // pred_check_branch
      %11 = sbr.rel (0) target = $region5
    $region4: #{tpu_custom_call.1} parent=1 // pred_region
      %s13 = ssub.s32 16, 16
      %14 = vsyncadd [#allocation5], %s13
      %17 = dma.hbm_to_smem %s0, 16, [#allocation2], [#allocation5]
    $region5: #{tpu_custom_call.1} parent=1 // pred_fallthru
      _
    // Predicated region
    $region6: #{tpu_custom_call.1} parent=1 // pred_check
      _
    $region7: #{tpu_custom_call.1} parent=1 // pred_check_branch
      %19 = sbr.rel (0) target = $region9
    $region8: #{tpu_custom_call.1} parent=1 // pred_region
      %s21 = ssub.s32 512, 512
      %22 = vsyncadd [#allocation3], %s21
      %s23 = sshll.u32 [#allocation6], 4
      %s24 = int_to_ptr.vmem [resolvable:$true] %s23
      %29 = dma.hbm_to_vmem [thread:$0]  %s1, 512, %s24, [#allocation3], 256, 256, 16
    $region9: #{tpu_custom_call.1} parent=1 // pred_fallthru
      _
    // Predicated region
    $region10: #{tpu_custom_call.1} parent=1 // pred_check
      _
    $region11: #{tpu_custom_call.1} parent=1 // pred_check_branch
      %31 = sbr.rel (0) target = $region13
    $region12: #{tpu_custom_call.1} parent=1 // pred_region
      %32 = dma.done [#allocation5], 16
    $region13: #{tpu_custom_call.1} parent=1 // pred_fallthru
      _
    // Predicated region
    $region14: #{tpu_custom_call.1} parent=1 // pred_check
      _
    $region15: #{tpu_custom_call.1} parent=1 // pred_check_branch
      %34 = sbr.rel (0) target = $region17
    $region16: #{tpu_custom_call.1} parent=1 // pred_region
      %35 = dma.done [#allocation3], 512
    $region17: #{tpu_custom_call.1} parent=1 // pred_fallthru
      _
    %36 = sfence
    %v37 = vld [vmem:[#allocation6] sm:$0xff]
    %v38 = vld [vmem:[#allocation6 + $0x8] sm:$0xff]
    %s39 = sld [smem:[#allocation2]]
    %v40 = vstv %s39
    %v41 = vmul.f32 %v37, %v40
    %v42 = vmul.f32 %v38, %v40
    %s43 = scalar_lea.vmem [#allocation6], 16
    %v44 = vld [vmem:[%s43] sm:$0xff]
    %v45 = vld [vmem:[%s43 + $0x8] sm:$0xff]
    %s46 = sld [smem:[#allocation2 + $0x1]]
    %v47 = vstv %s46
    %v48 = vmul.f32 %v44, %v47
    %v49 = vmul.f32 %v45, %v47
    %v50 = vadd.f32 %v41, %v48
    %v51 = vadd.f32 %v42, %v49
    %s52 = sld [smem:[#allocation2 + $0x2]]
    %v53 = vstv %s52
    %v54 = vadd.f32 %v50, %v53
    %v55 = vadd.f32 %v51, %v53
    %v56 = vsub.f32 0.0, %v54
    %v57 = vsub.f32 0.0, %v55
    %v58 = vmul.f32 %v56, 1.442695
    %v59 = vpow.pop %v58
    %v60 = vmul.f32 %v57, 1.442695
    %v61 = vpow.pop %v60
    %v62 = vadd.f32 %v59, 1.0
    %v63 = vadd.f32 %v61, 1.0
    %v64 = vrcp.pop %v62
    %v65 = vmul.f32 1.0, %v64
    %v66 = vrcp.pop %v63
    %v67 = vmul.f32 1.0, %v66
    %68 = vst [vmem:[#allocation7] sm:$0xff] %v65
    %69 = vst [vmem:[#allocation7 + $0x8] sm:$0xff] %v67
    // Predicated region
    $region18: #{tpu_custom_call.1} parent=1 // pred_check
      _
    $region19: #{tpu_custom_call.1} parent=1 // pred_check_branch
      %71 = sbr.rel (0) target = $region21
    $region20: #{tpu_custom_call.1} parent=1 // pred_region
      %s73 = ssub.s32 256, 256
      %74 = vsyncadd [#allocation4], %s73
      %s76 = sshll.u32 [#allocation7], 4
      %s77 = int_to_ptr.vmem [resolvable:$true] %s76
      %79 = dma.vmem_to_hbm [thread:$0]  %s77, 256, %s2, [#allocation4]
    $region21: #{tpu_custom_call.1} parent=1 // pred_fallthru
      _
    // Predicated region
    $region22: #{tpu_custom_call.1} parent=1 // pred_check
      _
    $region23: #{tpu_custom_call.1} parent=1 // pred_check_branch
      %81 = sbr.rel (0) target = $region25
    $region24: #{tpu_custom_call.1} parent=1 // pred_region
      %82 = dma.done [#allocation4], 256
    $region25: #{tpu_custom_call.1} parent=1 // pred_fallthru
      _
    %83 = vsyncpa [#allocation3], 1
    %84 = vsyncpa [#allocation4], 1
    %85 = vsyncpa [#allocation5], 1

</llo_original>
